<compile_context>
chip_gen: v7x
topology: tpu7x:2x2x1
jax: 0.10.0
libtpu: 0.0.40
codegen_flags: <defaults>
</compile_context>

<pallas_src>
import math
from functools import partial

import jax
import jax.numpy as jnp
from jax import lax
from jax.experimental import pallas as pl
from jax.experimental.pallas import tpu as pltpu

_LANE = 128


def _round_up(n, m):
    return ((n + m - 1) // m) * m


def _itemsize(dt):
    return jnp.dtype(dt).itemsize


def _vmem_capacity_bytes():
    try:
        info = pltpu.get_tpu_info()
        return int(getattr(info, "vmem_capacity_bytes", 128 << 20))
    except Exception:
        return 64 << 20


def _classblock_kernel(x_ref, w1_ref, b1_ref, scale_ref, shift_ref,
                       w2_ref, b2_ref, logits_ref, feat_ref, feat_sc,
                       *, approx_gelu):
    j = pl.program_id(1)

    # Bottleneck linear + GELU + BN(eval) computed once per batch tile, cached in VMEM.
    @pl.when(j == 0)
    def _():
        xa = x_ref[...].astype(w1_ref.dtype)
        h = jnp.dot(xa, w1_ref[...], preferred_element_type=jnp.float32)
        h = h + b1_ref[...]
        if approx_gelu:
            h = jax.nn.gelu(h, approximate=True)            # tanh form -> EUP
        else:
            h = 0.5 * h * (1.0 + lax.erf(h * (1.0 / math.sqrt(2.0))))  # torch default
        feat = h * scale_ref[...] + shift_ref[...]           # folded BatchNorm1d (eval)
        feat_ref[...] = feat.astype(feat_ref.dtype)
        feat_sc[...] = feat.astype(feat_sc.dtype)

    # Classifier linear over the current class tile.
    logits = jnp.dot(feat_sc[...], w2_ref[...],
                     preferred_element_type=jnp.float32) + b2_ref[...]
    logits_ref[...] = logits.astype(logits_ref.dtype)


def prepare_params(params, matmul_dtype=jnp.bfloat16, eps=1e-5, c_block=2048):
    """One-time prep: fold BN stats, transpose weights to [in,out], pad to 128 lanes."""
    w1, b1 = params["w1"], params["b1"]
    gamma, beta = params["gamma"], params["beta"]
    run_mean, run_var = params["running_mean"], params["running_var"]
    w2, b2 = params["w2"], params["b2"]

    H, D = w1.shape                      # bottleneck, input_dim
    C = w2.shape[0]                      # class_num
    Dp, Hp = _round_up(D, _LANE), _round_up(H, _LANE)
    # Classifier tile width; Cp is padded to an exact multiple so the class grid axis
    # never reads/writes ragged blocks.
    TC = min(_round_up(C, _LANE), _round_up(c_block, _LANE))
    Cp = _round_up(C, TC)

    scale = gamma / jnp.sqrt(run_var + eps)        # [H]
    shift = beta - run_mean * scale                # [H]

    # Zero-padded, pre-transposed weights (padding rows/cols contribute 0;
    # padded scale entries are 1 so padded features stay exactly 0).
    w1_t = jnp.zeros((Dp, Hp), matmul_dtype).at[:D, :H].set(w1.T.astype(matmul_dtype))
    w2_t = jnp.zeros((Hp, Cp), matmul_dtype).at[:H, :C].set(w2.T.astype(matmul_dtype))
    b1_r = jnp.zeros((1, Hp), jnp.float32).at[0, :H].set(b1.astype(jnp.float32))
    b2_r = jnp.zeros((1, Cp), jnp.float32).at[0, :C].set(b2.astype(jnp.float32))
    scale_r = jnp.ones((1, Hp), jnp.float32).at[0, :H].set(scale.astype(jnp.float32))
    shift_r = jnp.zeros((1, Hp), jnp.float32).at[0, :H].set(shift.astype(jnp.float32))

    return dict(w1_t=w1_t, b1=b1_r, scale=scale_r, shift=shift_r,
                w2_t=w2_t, b2=b2_r, dims=(D, H, C), c_tile=TC,
                matmul_dtype=matmul_dtype)


def classblock_forward(x, prepped, block_b=None, feature_dtype=None,
                       gelu_approximate=False):
    """x: [B, input_dim]. Returns (logits [B, class_num], feature [B, bottleneck])."""
    D, H, C = prepped["dims"]
    mdt = prepped["matmul_dtype"]
    Dp, Hp = prepped["w1_t"].shape
    Cp = prepped["w2_t"].shape[1]
    TC = prepped["c_tile"]
    nc = Cp // TC

    B, Din = x.shape
    assert Din == D, f"input_dim mismatch: {Din} vs {D}"

    if feature_dtype is None:
        # bf16 feature writeback by default on the bf16 path (mem-bound head);
        # pass feature_dtype=jnp.float32 for full-precision features.
        feature_dtype = (jnp.float32 if jnp.dtype(mdt) == jnp.dtype(jnp.float32)
                         else jnp.bfloat16)

    vmem_cap = _vmem_capacity_bytes()
    if block_b is None:
        block_b = 256 if vmem_cap <= (64 << 20) else 512

    # Row alignment: bf16 packs 16 rows per vreg sublane group, f32 packs 8.
    sub = 16 if _itemsize(mdt) < 4 else 8
    b_al = _round_up(B, sub)
    # Ensure >= 2 batch steps when possible so the "parallel" axis spans both
    # TensorCores on v7x.
    TB = _round_up(min(block_b, max(pl.cdiv(b_al, 2), sub)), sub)
    Bp = _round_up(B, TB)
    nb = Bp // TB

    # Skip the host-side pad copy entirely when shapes are already aligned; keep x in
    # its original dtype (cast to the matmul dtype happens inside the kernel).
    xdt = x.dtype
    if Bp == B and Dp == D:
        x_p = x
    else:
        x_p = jnp.zeros((Bp, Dp), xdt).at[:B, :D].set(x)

    # Constant-index operands: single-buffered (their block index never changes).
    def const_spec(shape):
        return pl.BlockSpec(shape, lambda i, j: (0, 0), pipeline_mode=pl.Buffered(1))

    if nc == 1:
        w2_spec = pl.BlockSpec((Hp, TC), lambda i, j: (0, 0),
                               pipeline_mode=pl.Buffered(1))
        b2_spec = pl.BlockSpec((1, TC), lambda i, j: (0, 0),
                               pipeline_mode=pl.Buffered(1))
        w2_bufs = 1
    else:
        w2_spec = pl.BlockSpec((Hp, TC), lambda i, j: (0, j))
        b2_spec = pl.BlockSpec((1, TC), lambda i, j: (0, j))
        w2_bufs = 2

    # Explicit VMEM budget from the actual footprint (+50% headroom), clamped to chip.
    footprint = (
        Dp * Hp * _itemsize(mdt)                         # w1^T (single buffer)
        + 3 * 8 * Hp * 4                                 # b1 / scale / shift
        + (Hp * TC * _itemsize(mdt) + 8 * TC * 4) * w2_bufs
        + TB * Dp * _itemsize(xdt) * 2                   # x tiles (double buffered)
        + TB * TC * 4 * 2                                # logits tiles
        + TB * Hp * _itemsize(feature_dtype) * 2         # feature tiles
        + TB * Hp * _itemsize(mdt)                       # feature scratch
    )
    vmem_limit = int(min(max(int(footprint * 1.5) + (2 << 20), 32 << 20),
                         vmem_cap - (4 << 20)))

    kernel = partial(_classblock_kernel, approx_gelu=gelu_approximate)

    logits_p, feat_p = pl.pallas_call(
        kernel,
        out_shape=(
            jax.ShapeDtypeStruct((Bp, Cp), jnp.float32),
            jax.ShapeDtypeStruct((Bp, Hp), feature_dtype),
        ),
        grid=(nb, nc),
        in_specs=[
            pl.BlockSpec((TB, Dp), lambda i, j: (i, 0)),   # x (batch tiled)
            const_spec((Dp, Hp)),                          # w1^T (resident, 1 buffer)
            const_spec((1, Hp)),                           # b1
            const_spec((1, Hp)),                           # bn scale
            const_spec((1, Hp)),                           # bn shift
            w2_spec,                                       # w2^T (class tiled)
            b2_spec,                                       # b2
        ],
        out_specs=(
            pl.BlockSpec((TB, TC), lambda i, j: (i, j)),   # logits tile
            pl.BlockSpec((TB, Hp), lambda i, j: (i, 0)),   # feature tile (held over j)
        ),
        scratch_shapes=[pltpu.VMEM((TB, Hp), mdt)],        # cached feature for classifier
        compiler_params=pltpu.CompilerParams(
            dimension_semantics=("parallel", "arbitrary"),
            vmem_limit_bytes=vmem_limit),
    )(x_p, prepped["w1_t"], prepped["b1"], prepped["scale"],
      prepped["shift"], prepped["w2_t"], prepped["b2"])

    return logits_p[:B, :C], feat_p[:B, :H]


def init_params(key, input_dim, class_num, num_bottleneck):
    k1, k2, k3 = jax.random.split(key, 3)
    # weights_init_kaiming: Linear -> kaiming_normal_(fan_out) => std = sqrt(2 / fan_out)
    w1 = jax.random.normal(k1, (num_bottleneck, input_dim), jnp.float32) * math.sqrt(
        2.0 / num_bottleneck)
    b1 = jnp.zeros((num_bottleneck,), jnp.float32)
    # BatchNorm1d: weight ~ N(1, 0.02), bias = 0; fresh running stats.
    gamma = 1.0 + 0.02 * jax.random.normal(k2, (num_bottleneck,), jnp.float32)
    beta = jnp.zeros((num_bottleneck,), jnp.float32)
    running_mean = jnp.zeros((num_bottleneck,), jnp.float32)
    running_var = jnp.ones((num_bottleneck,), jnp.float32)
    # weights_init_classifier: normal_(std=0.001), bias = 0
    w2 = 0.001 * jax.random.normal(k3, (class_num, num_bottleneck), jnp.float32)
    b2 = jnp.zeros((class_num,), jnp.float32)
    return dict(w1=w1, b1=b1, gamma=gamma, beta=beta,
                running_mean=running_mean, running_var=running_var,
                w2=w2, b2=b2)


def _reference(x, params, matmul_dtype=jnp.float32, approximate=False, eps=1e-5):
    """Plain-JAX reference of the same math (optionally bf16 matmul inputs / tanh GELU)."""
    h = jnp.dot(x.astype(matmul_dtype), params["w1"].T.astype(matmul_dtype),
                preferred_element_type=jnp.float32) + params["b1"]
    if approximate:
        h = jax.nn.gelu(h, approximate=True)
    else:
        h = 0.5 * h * (1.0 + lax.erf(h / jnp.sqrt(2.0)))
    scale = params["gamma"] / jnp.sqrt(params["running_var"] + eps)
    shift = params["beta"] - params["running_mean"] * scale
    feat = h * scale + shift
    logits = jnp.dot(feat.astype(matmul_dtype), params["w2"].T.astype(matmul_dtype),
                     preferred_element_type=jnp.float32) + params["b2"]
    return logits, feat


if __name__ == "__main__":
    key = jax.random.PRNGKey(0)
    kx, kp, kx2, kp2 = jax.random.split(key, 4)

    # Case 1: small shapes, f32 matmul, f32 feature, exact erf GELU (tight tolerance).
    B, INPUT_DIM, BOTTLENECK, CLASS_NUM = 8, 64, 128, 16
    x = jax.random.normal(kx, (B, INPUT_DIM), jnp.float32)
    params = init_params(kp, INPUT_DIM, CLASS_NUM, BOTTLENECK)
    prep_f32 = prepare_params(params, matmul_dtype=jnp.float32)
    logits_f32, feat_f32 = classblock_forward(x, prep_f32, feature_dtype=jnp.float32)
    jax.block_until_ready((logits_f32, feat_f32))
    ref_logits, ref_feat = _reference(x, params, jnp.float32)
    assert logits_f32.shape == (B, CLASS_NUM) and feat_f32.shape == (B, BOTTLENECK)
    assert jnp.allclose(logits_f32, ref_logits, atol=1e-4, rtol=1e-4)
    assert jnp.allclose(feat_f32, ref_feat, atol=1e-4, rtol=1e-4)

    # Case 2: bf16 MXU path, unaligned B/H/C (exercises padding), multi batch tile,
    # tiled classifier (c_block=128 -> 2 class blocks), tanh GELU, bf16 feature out.
    B2, D2, H2, C2 = 48, 96, 160, 200
    x2 = jax.random.normal(kx2, (B2, D2), jnp.float32)
    params2 = init_params(kp2, D2, C2, H2)
    prep_bf16 = prepare_params(params2, matmul_dtype=jnp.bfloat16, c_block=128)
    logits_bf, feat_bf = classblock_forward(x2, prep_bf16, block_b=32,
                                            gelu_approximate=True)
    jax.block_until_ready((logits_bf, feat_bf))
    ref_logits_bf, ref_feat_bf = _reference(x2, params2, jnp.bfloat16, approximate=True)
    assert logits_bf.shape == (B2, C2) and feat_bf.shape == (B2, H2)
    assert jnp.allclose(logits_bf, ref_logits_bf, atol=2e-2, rtol=2e-2)
    assert jnp.allclose(feat_bf.astype(jnp.float32), ref_feat_bf, atol=5e-2, rtol=5e-2)

    print("KERNEL_OK")
</pallas_src>

<mosaic_0001>
module attributes {stable_mosaic.version = 11 : i64} {
  func.func @_classblock_kernel(%arg0: i32, %arg1: i32, %arg2: memref<8x128xf32, #tpu.memory_space<vmem>>, %arg3: memref<128x128xf32, #tpu.memory_space<vmem>>, %arg4: memref<1x128xf32, #tpu.memory_space<vmem>>, %arg5: memref<1x128xf32, #tpu.memory_space<vmem>>, %arg6: memref<1x128xf32, #tpu.memory_space<vmem>>, %arg7: memref<128x128xf32, #tpu.memory_space<vmem>>, %arg8: memref<1x128xf32, #tpu.memory_space<vmem>>, %arg9: memref<8x128xf32, #tpu.memory_space<vmem>>, %arg10: memref<8x128xf32, #tpu.memory_space<vmem>>, %arg11: memref<8x128xf32, #tpu.memory_space<vmem>>) attributes {dimension_semantics = [#tpu.dimension_semantics<parallel>, #tpu.dimension_semantics<arbitrary>], iteration_bounds = array<i64: 1, 1>, scalar_prefetch = 0 : i64, scratch_operands = 1 : i64, tpu.core_type = #tpu.core_type<tc>, window_params = [{transform_indices = @transform_0, window_bounds = array<i64: 8, 128>}, {pipeline_mode = #tpu.pipeline_mode<synchronous>, transform_indices = @transform_1, window_bounds = array<i64: 128, 128>}, {pipeline_mode = #tpu.pipeline_mode<synchronous>, transform_indices = @transform_2, window_bounds = array<i64: 1, 128>}, {pipeline_mode = #tpu.pipeline_mode<synchronous>, transform_indices = @transform_3, window_bounds = array<i64: 1, 128>}, {pipeline_mode = #tpu.pipeline_mode<synchronous>, transform_indices = @transform_4, window_bounds = array<i64: 1, 128>}, {pipeline_mode = #tpu.pipeline_mode<synchronous>, transform_indices = @transform_5, window_bounds = array<i64: 128, 128>}, {pipeline_mode = #tpu.pipeline_mode<synchronous>, transform_indices = @transform_6, window_bounds = array<i64: 1, 128>}, {transform_indices = @transform_7, window_bounds = array<i64: 8, 128>}, {transform_indices = @transform_8, window_bounds = array<i64: 8, 128>}]} {
    %c0_i32 = arith.constant 0 : i32
    %0 = arith.cmpi eq, %arg1, %c0_i32 : i32
    %1 = arith.extui %0 : i1 to i32
    %c0_i32_0 = arith.constant 0 : i32
    %2 = arith.cmpi ne, %1, %c0_i32_0 : i32
    scf.if %2 {
      %c0_8 = arith.constant 0 : index
      %c0_9 = arith.constant 0 : index
      %10 = vector.load %arg2[%c0_8, %c0_9] : memref<8x128xf32, #tpu.memory_space<vmem>>, vector<8x128xf32>
      %c0_10 = arith.constant 0 : index
      %c0_11 = arith.constant 0 : index
      %11 = vector.load %arg3[%c0_10, %c0_11] : memref<128x128xf32, #tpu.memory_space<vmem>>, vector<128x128xf32>
      %cst_12 = arith.constant dense<0.000000e+00> : vector<8x128xf32>
      %12 = tpu.matmul %10, %11, %cst_12 {dimension_numbers = #tpu.dot_dimension_numbers<[1], [0], [0], [1], [0, 0, 1, 1], [], []>} : vector<8x128xf32>, vector<128x128xf32>, vector<8x128xf32> -> vector<8x128xf32>
      %c0_13 = arith.constant 0 : index
      %c0_14 = arith.constant 0 : index
      %13 = vector.load %arg4[%c0_13, %c0_14] : memref<1x128xf32, #tpu.memory_space<vmem>>, vector<1x128xf32>
      %14 = vector.broadcast %13 : vector<1x128xf32> to vector<8x128xf32>
      %15 = arith.addf %12, %14 : vector<8x128xf32>
      %cst_15 = arith.constant 5.000000e-01 : f32
      %16 = vector.broadcast %cst_15 : f32 to vector<8x128xf32>
      %17 = arith.mulf %16, %15 : vector<8x128xf32>
      %cst_16 = arith.constant 0.707106769 : f32
      %18 = vector.broadcast %cst_16 : f32 to vector<8x128xf32>
      %19 = arith.mulf %15, %18 : vector<8x128xf32>
      %20 = math.erf %19 : vector<8x128xf32>
      %cst_17 = arith.constant 1.000000e+00 : f32
      %21 = vector.broadcast %cst_17 : f32 to vector<8x128xf32>
      %22 = arith.addf %21, %20 : vector<8x128xf32>
      %23 = arith.mulf %17, %22 : vector<8x128xf32>
      %c0_18 = arith.constant 0 : index
      %c0_19 = arith.constant 0 : index
      %24 = vector.load %arg5[%c0_18, %c0_19] : memref<1x128xf32, #tpu.memory_space<vmem>>, vector<1x128xf32>
      %25 = vector.broadcast %24 : vector<1x128xf32> to vector<8x128xf32>
      %26 = arith.mulf %23, %25 : vector<8x128xf32>
      %c0_20 = arith.constant 0 : index
      %c0_21 = arith.constant 0 : index
      %27 = vector.load %arg6[%c0_20, %c0_21] : memref<1x128xf32, #tpu.memory_space<vmem>>, vector<1x128xf32>
      %28 = vector.broadcast %27 : vector<1x128xf32> to vector<8x128xf32>
      %29 = arith.addf %26, %28 : vector<8x128xf32>
      %c0_22 = arith.constant 0 : index
      %c0_23 = arith.constant 0 : index
      %30 = vector.load %arg10[%c0_22, %c0_23] : memref<8x128xf32, #tpu.memory_space<vmem>>, vector<8x128xf32>
      tpu.vector_store %arg10[%c0_22, %c0_23], %29 {strides = array<i32>} : memref<8x128xf32, #tpu.memory_space<vmem>>, vector<8x128xf32>,
      %c0_24 = arith.constant 0 : index
      %c0_25 = arith.constant 0 : index
      %31 = vector.load %arg11[%c0_24, %c0_25] : memref<8x128xf32, #tpu.memory_space<vmem>>, vector<8x128xf32>
      tpu.vector_store %arg11[%c0_24, %c0_25], %29 {strides = array<i32>} : memref<8x128xf32, #tpu.memory_space<vmem>>, vector<8x128xf32>,
    } else {
    }
    %c0 = arith.constant 0 : index
    %c0_1 = arith.constant 0 : index
    %3 = vector.load %arg11[%c0, %c0_1] : memref<8x128xf32, #tpu.memory_space<vmem>>, vector<8x128xf32>
    %c0_2 = arith.constant 0 : index
    %c0_3 = arith.constant 0 : index
    %4 = vector.load %arg7[%c0_2, %c0_3] : memref<128x128xf32, #tpu.memory_space<vmem>>, vector<128x128xf32>
    %cst = arith.constant dense<0.000000e+00> : vector<8x128xf32>
    %5 = tpu.matmul %3, %4, %cst {dimension_numbers = #tpu.dot_dimension_numbers<[1], [0], [0], [1], [0, 0, 1, 1], [], []>} : vector<8x128xf32>, vector<128x128xf32>, vector<8x128xf32> -> vector<8x128xf32>
    %c0_4 = arith.constant 0 : index
    %c0_5 = arith.constant 0 : index
    %6 = vector.load %arg8[%c0_4, %c0_5] : memref<1x128xf32, #tpu.memory_space<vmem>>, vector<1x128xf32>
    %7 = vector.broadcast %6 : vector<1x128xf32> to vector<8x128xf32>
    %8 = arith.addf %5, %7 : vector<8x128xf32>
    %c0_6 = arith.constant 0 : index
    %c0_7 = arith.constant 0 : index
    %9 = vector.load %arg9[%c0_6, %c0_7] : memref<8x128xf32, #tpu.memory_space<vmem>>, vector<8x128xf32>
    tpu.vector_store %arg9[%c0_6, %c0_7], %8 {strides = array<i32>} : memref<8x128xf32, #tpu.memory_space<vmem>>, vector<8x128xf32>,
    return
  }
  func.func @transform_0(%arg0: i32, %arg1: i32) -> (i32, i32) {
    %c0_i32 = arith.constant 0 : i32
    %c0_i32_0 = arith.constant 0 : i32
    return %arg0, %c0_i32 : i32, i32
  }
  func.func @transform_1(%arg0: i32, %arg1: i32) -> (i32, i32) {
    %c0_i32 = arith.constant 0 : i32
    %c0_i32_0 = arith.constant 0 : i32
    %c0_i32_1 = arith.constant 0 : i32
    return %c0_i32, %c0_i32_0 : i32, i32
  }
  func.func @transform_2(%arg0: i32, %arg1: i32) -> (i32, i32) {
    %c0_i32 = arith.constant 0 : i32
    %c0_i32_0 = arith.constant 0 : i32
    %c0_i32_1 = arith.constant 0 : i32
    return %c0_i32, %c0_i32_0 : i32, i32
  }
  func.func @transform_3(%arg0: i32, %arg1: i32) -> (i32, i32) {
    %c0_i32 = arith.constant 0 : i32
    %c0_i32_0 = arith.constant 0 : i32
    %c0_i32_1 = arith.constant 0 : i32
    return %c0_i32, %c0_i32_0 : i32, i32
  }
  func.func @transform_4(%arg0: i32, %arg1: i32) -> (i32, i32) {
    %c0_i32 = arith.constant 0 : i32
    %c0_i32_0 = arith.constant 0 : i32
    %c0_i32_1 = arith.constant 0 : i32
    return %c0_i32, %c0_i32_0 : i32, i32
  }
  func.func @transform_5(%arg0: i32, %arg1: i32) -> (i32, i32) {
    %c0_i32 = arith.constant 0 : i32
    %c0_i32_0 = arith.constant 0 : i32
    %c0_i32_1 = arith.constant 0 : i32
    return %c0_i32, %c0_i32_0 : i32, i32
  }
  func.func @transform_6(%arg0: i32, %arg1: i32) -> (i32, i32) {
    %c0_i32 = arith.constant 0 : i32
    %c0_i32_0 = arith.constant 0 : i32
    %c0_i32_1 = arith.constant 0 : i32
    return %c0_i32, %c0_i32_0 : i32, i32
  }
  func.func @transform_7(%arg0: i32, %arg1: i32) -> (i32, i32) {
    %c0_i32 = arith.constant 0 : i32
    return %arg0, %arg1 : i32, i32
  }
  func.func @transform_8(%arg0: i32, %arg1: i32) -> (i32, i32) {
    %c0_i32 = arith.constant 0 : i32
    %c0_i32_0 = arith.constant 0 : i32
    return %arg0, %c0_i32 : i32, i32
  }
}

</mosaic_0001>

<llo_original>
// kernel: tpu_custom_call.1
$region0: #{tpu_custom_call.1}
  #allocation0 [shape = 'u32[]', space=smem, size = 0x4, offset = 0x4, fixed_abs, tag = 'smem constant byte address 0x4 - core index']
  #allocation1 [shape = 'u32[144,128]{1,0:T(1,128)}', space=vmem, size = 0x12000, scoped, tag = 'internal scratch']
  #allocation2 [shape = 'f32[8,128]{1,0:T(8,128)}', space=vmem, size = 0x1000, scoped, tag = 'scratch operand']
  %s0 = inlined_call_operand.hbm [shape: f32[8,128], index: 0, kind: input, shape index: {}]
  %s1 = inlined_call_operand.hbm [shape: f32[128,128], index: 1, kind: input, shape index: {}]
  %s2 = inlined_call_operand.vmem [shape: f32[1,128], index: 2, kind: input, shape index: {}]
  %s3 = inlined_call_operand.vmem [shape: f32[1,128], index: 3, kind: input, shape index: {}]
  %s4 = inlined_call_operand.vmem [shape: f32[1,128], index: 4, kind: input, shape index: {}]
  %s5 = inlined_call_operand.hbm [shape: f32[128,128], index: 5, kind: input, shape index: {}]
  %s6 = inlined_call_operand.vmem [shape: f32[1,128], index: 6, kind: input, shape index: {}]
  %s7 = inlined_call_operand.hbm [shape: f32[8,128], index: 7, kind: output, shape index: {0}]
  %s8 = inlined_call_operand.hbm [shape: f32[8,128], index: 8, kind: output, shape index: {1}]
  %9 = xla_tuple %s7, %s8
  %s10 = sld [smem:[#allocation0]]
  $region62: #{tpu_custom_call.1} parent=0
    _
  %s12 = ssub.s32 1, %s10
  %s13 = scalar_select 0, %s12, %s10
  $region1: #{tpu_custom_call.1} parent=0
    #allocation3 [shape = 'u8[4096]{0}', space=vmem, size = 0x1000, scoped, tag = 'input window, operand 0, single buffered']
    #allocation4 [shape = 's32[1]{0}', space=sflag, size = 0x4, scoped, tag = 'scoped memory for tpu_custom_call.1']
    #allocation5 [shape = 's32[1]{0}', space=sflag, size = 0x4, scoped, tag = 'scoped memory for tpu_custom_call.1']
    #allocation6 [shape = 'u8[65536]{0}', space=vmem, size = 0x10000, scoped, tag = 'input window, operand 1, single buffered']
    #allocation7 [shape = 's32[1]{0}', space=sflag, size = 0x4, scoped, tag = 'scoped memory for tpu_custom_call.1']
    #allocation8 [shape = 'u8[65536]{0}', space=vmem, size = 0x10000, scoped, tag = 'input window, operand 5, single buffered']
    #allocation9 [shape = 'u8[4096]{0}', space=vmem, size = 0x1000, scoped, tag = 'output window, operand 0, single buffered']
    #allocation10 [shape = 'u8[4096]{0}', space=vmem, size = 0x1000, scoped, tag = 'output window, operand 1, single buffered']
    #allocation11 [shape = 's32[1]{0}', space=sflag, size = 0x4, scoped, tag = 'scoped memory for tpu_custom_call.1']
    %14 = vsyncpa [#allocation4], 0
    %15 = vsyncpa [#allocation7], 0
    %16 = vsyncpa [#allocation5], 0
    %17 = vsyncpa [#allocation11], 0
    // Predicated region
    $region2: #{tpu_custom_call.1} parent=1 // pred_check
      _
    $region3: #{tpu_custom_call.1} parent=1 // pred_check_branch
      %19 = sbr.rel (0) target = $region5
    $region4: #{tpu_custom_call.1} parent=1 // pred_region
      %s21 = ssub.s32 128, 128
      %22 = vsyncadd [#allocation4], %s21
      %s24 = sshll.u32 [#allocation3], 4
      %s25 = int_to_ptr.vmem [resolvable:$true] %s24
      %27 = dma.hbm_to_vmem [thread:$0]  %s0, 128, %s25, [#allocation4]
    $region5: #{tpu_custom_call.1} parent=1 // pred_fallthru
      _
    // Predicated region
    $region6: #{tpu_custom_call.1} parent=1 // pred_check
      _
    $region7: #{tpu_custom_call.1} parent=1 // pred_check_branch
      %29 = sbr.rel (0) target = $region9
    $region8: #{tpu_custom_call.1} parent=1 // pred_region
      %s31 = ssub.s32 2048, 2048
      %32 = vsyncadd [#allocation7], %s31
      %s33 = sshll.u32 [#allocation6], 4
      %s34 = int_to_ptr.vmem [resolvable:$true] %s33
      %39 = dma.hbm_to_vmem [thread:$0]  %s1, 2048, %s34, [#allocation7], 128, 128, 8
    $region9: #{tpu_custom_call.1} parent=1 // pred_fallthru
      _
    // Predicated region
    $region10: #{tpu_custom_call.1} parent=1 // pred_check
      _
    $region11: #{tpu_custom_call.1} parent=1 // pred_check_branch
      %41 = sbr.rel (0) target = $region13
    $region12: #{tpu_custom_call.1} parent=1 // pred_region
      _
    $region13: #{tpu_custom_call.1} parent=1 // pred_fallthru
      _
    // Predicated region
    $region14: #{tpu_custom_call.1} parent=1 // pred_check
      _
    $region15: #{tpu_custom_call.1} parent=1 // pred_check_branch
      %43 = sbr.rel (0) target = $region17
    $region16: #{tpu_custom_call.1} parent=1 // pred_region
      _
    $region17: #{tpu_custom_call.1} parent=1 // pred_fallthru
      _
    // Predicated region
    $region18: #{tpu_custom_call.1} parent=1 // pred_check
      _
    $region19: #{tpu_custom_call.1} parent=1 // pred_check_branch
      %45 = sbr.rel (0) target = $region21
    $region20: #{tpu_custom_call.1} parent=1 // pred_region
      _
    $region21: #{tpu_custom_call.1} parent=1 // pred_fallthru
      _
    // Predicated region
    $region22: #{tpu_custom_call.1} parent=1 // pred_check
      _
    $region23: #{tpu_custom_call.1} parent=1 // pred_check_branch
      %47 = sbr.rel (0) target = $region25
    $region24: #{tpu_custom_call.1} parent=1 // pred_region
      %s49 = ssub.s32 2048, 2048
      %50 = vsyncadd [#allocation7], %s49
      %s51 = sshll.u32 [#allocation8], 4
      %s52 = int_to_ptr.vmem [resolvable:$true] %s51
      %57 = dma.hbm_to_vmem [thread:$0]  %s5, 2048, %s52, [#allocation7], 128, 128, 8
    $region25: #{tpu_custom_call.1} parent=1 // pred_fallthru
      _
    // Predicated region
    $region26: #{tpu_custom_call.1} parent=1 // pred_check
      _
    $region27: #{tpu_custom_call.1} parent=1 // pred_check_branch
      %59 = sbr.rel (0) target = $region29
    $region28: #{tpu_custom_call.1} parent=1 // pred_region
      _
    $region29: #{tpu_custom_call.1} parent=1 // pred_fallthru
      _
    // Predicated region
    $region30: #{tpu_custom_call.1} parent=1 // pred_check
      _
    $region31: #{tpu_custom_call.1} parent=1 // pred_check_branch
      %61 = sbr.rel (0) target = $region33
    $region32: #{tpu_custom_call.1} parent=1 // pred_region
      %62 = dma.done [#allocation4], 128
    $region33: #{tpu_custom_call.1} parent=1 // pred_fallthru
      _
    // Predicated region
    $region34: #{tpu_custom_call.1} parent=1 // pred_check
      _
    $region35: #{tpu_custom_call.1} parent=1 // pred_check_branch
      %64 = sbr.rel (0) target = $region37
    $region36: #{tpu_custom_call.1} parent=1 // pred_region
      %65 = dma.done [#allocation7], 2048
    $region37: #{tpu_custom_call.1} parent=1 // pred_fallthru
      _
    // Predicated region
    $region38: #{tpu_custom_call.1} parent=1 // pred_check
      _
    $region39: #{tpu_custom_call.1} parent=1 // pred_check_branch
      %67 = sbr.rel (0) target = $region41
    $region40: #{tpu_custom_call.1} parent=1 // pred_region
      %68 = dma.done [#allocation7], 2048
    $region41: #{tpu_custom_call.1} parent=1 // pred_fallthru
      _
    %p69 = scmp.eq.s32.totalorder 0, 0
    // Predicated region
    $region42: #{tpu_custom_call.1} parent=1 // pred_check
      %p70 = pneg %p69
    $region43: #{tpu_custom_call.1} parent=1 // pred_check_branch
      %72 = sbr.rel (%p70) target = $region45
    $region44: #{tpu_custom_call.1} parent=1 // pred_region
      %v73 = vld [vmem:[#allocation3] sm:$0xff]
      %v74 = vld [vmem:[#allocation6] sm:$0xff]
      %v75 = vld [vmem:[#allocation6 + $0x8] sm:$0xff]
      %v76 = vld [vmem:[#allocation6 + $0x10] sm:$0xff]
      %v77 = vld [vmem:[#allocation6 + $0x18] sm:$0xff]
      %v78 = vld [vmem:[#allocation6 + $0x20] sm:$0xff]
      %v79 = vld [vmem:[#allocation6 + $0x28] sm:$0xff]
      %v80 = vld [vmem:[#allocation6 + $0x30] sm:$0xff]
      %v81 = vld [vmem:[#allocation6 + $0x38] sm:$0xff]
      %v82 = vld [vmem:[#allocation6 + $0x40] sm:$0xff]
      %v83 = vld [vmem:[#allocation6 + $0x48] sm:$0xff]
      %v84 = vld [vmem:[#allocation6 + $0x50] sm:$0xff]
      %v85 = vld [vmem:[#allocation6 + $0x58] sm:$0xff]
      %v86 = vld [vmem:[#allocation6 + $0x60] sm:$0xff]
      %v87 = vld [vmem:[#allocation6 + $0x68] sm:$0xff]
      %v88 = vld [vmem:[#allocation6 + $0x70] sm:$0xff]
      %v89 = vld [vmem:[#allocation6 + $0x78] sm:$0xff]
      %v90 = vld [vmem:[%s2] sm:$0x1]
      %v92 = vlaneseq
      %v93 = vshrl.u32 %v92, 7
      %v94 = vsub.s32 0, %v93
      %v95 = vrot.slane %v90, %v94
      %97 = vmatprep.subr.mxu0 0.0
      %98 = vmatpush1.msra.mxu0 %v74
      %99 = vmatprep.subr.mxu0 0.0
      %100 = vmatpush1.msra.mxu0 %v75
      %101 = vmatprep.subr.mxu0 0.0
      %102 = vmatpush1.msra.mxu0 %v76
      %103 = vmatprep.subr.mxu0 0.0
      %104 = vmatpush1.msra.mxu0 %v77
      %105 = vmatprep.subr.mxu0 0.0
      %106 = vmatpush1.msra.mxu0 %v78
      %107 = vmatprep.subr.mxu0 0.0
      %108 = vmatpush1.msra.mxu0 %v79
      %109 = vmatprep.subr.mxu0 0.0
      %110 = vmatpush1.msra.mxu0 %v80
      %111 = vmatprep.subr.mxu0 0.0
      %112 = vmatpush1.msra.mxu0 %v81
      %113 = vmatprep.subr.mxu0 0.0
      %114 = vmatpush1.msra.mxu0 %v82
      %115 = vmatprep.subr.mxu0 0.0
      %116 = vmatpush1.msra.mxu0 %v83
      %117 = vmatprep.subr.mxu0 0.0
      %118 = vmatpush1.msra.mxu0 %v84
      %119 = vmatprep.subr.mxu0 0.0
      %120 = vmatpush1.msra.mxu0 %v85
      %121 = vmatprep.subr.mxu0 0.0
      %122 = vmatpush1.msra.mxu0 %v86
      %123 = vmatprep.subr.mxu0 0.0
      %124 = vmatpush1.msra.mxu0 %v87
      %125 = vmatprep.subr.mxu0 0.0
      %126 = vmatpush1.msra.mxu0 %v88
      %127 = vmatprep.subr.mxu0 0.0
      %128 = vmatpush1.msra.mxu0 %v89
      %129 = vmatprep.subr.mxu0 0.0
      %130 = vmatpush1.msra.mxu0 0.0
      %131 = vmatprep.subr.mxu0 0.0
      %132 = vmatpush1.msra.mxu0 0.0
      %133 = vmatprep.subr.mxu0 0.0
      %134 = vmatpush1.msra.mxu0 0.0
      %135 = vmatprep.subr.mxu0 0.0
      %136 = vmatpush1.msra.mxu0 0.0
      %137 = vmatprep.subr.mxu0 0.0
      %138 = vmatpush1.msra.mxu0 0.0
      %139 = vmatprep.subr.mxu0 0.0
      %140 = vmatpush1.msra.mxu0 0.0
      %141 = vmatprep.subr.mxu0 0.0
      %142 = vmatpush1.msra.mxu0 0.0
      %143 = vmatprep.subr.mxu0 0.0
      %144 = vmatpush1.msra.mxu0 0.0
      %145 = vmatprep.subr.mxu0 0.0
      %146 = vmatpush1.msra.mxu0 0.0
      %147 = vmatprep.subr.mxu0 0.0
      %148 = vmatpush1.msra.mxu0 0.0
      %149 = vmatprep.subr.mxu0 0.0
      %150 = vmatpush1.msra.mxu0 0.0
      %151 = vmatprep.subr.mxu0 0.0
      %152 = vmatpush1.msra.mxu0 0.0
      %153 = vmatprep.subr.mxu0 0.0
      %154 = vmatpush1.msra.mxu0 0.0
      %155 = vmatprep.subr.mxu0 0.0
      %156 = vmatpush1.msra.mxu0 0.0
      %157 = vmatprep.subr.mxu0 0.0
      %158 = vmatpush1.msra.mxu0 0.0
      %159 = vmatprep.subr.mxu0 0.0
      %160 = vmatpush1.msra.mxu0 0.0
      %161 = vmatprep.mubr.f32.mxu0 0.0
      %162 = vmatmul.mubr.f32.gmra.mrb[0].mxu0 %v73
      %v163 = vpop.f32.mrb[0].mxu0
      %v164 = vadd.f32 %v95, %v163
      %v165 = vpop.f32.mrb[0].mxu0
      %166 = vdwg.mxu0
      %v167 = vmul.f32 %v164, 0.5
      %v168 = vmul.f32 %v164, 0.70710677
      %v169 = verf.f32.pop %v168
      %v170 = vadd.f32 %v169, 1.0
      %v171 = vmul.f32 %v167, %v170
      %v172 = vld [vmem:[%s3] sm:$0x1]
      %v174 = vlaneseq
      %v175 = vshrl.u32 %v174, 7
      %v176 = vsub.s32 0, %v175
      %v177 = vrot.slane %v172, %v176
      %v179 = vmul.f32 %v171, %v177
      %v180 = vld [vmem:[%s4] sm:$0x1]
      %v182 = vlaneseq
      %v183 = vshrl.u32 %v182, 7
      %v184 = vsub.s32 0, %v183
      %v185 = vrot.slane %v180, %v184
      %v187 = vadd.f32 %v179, %v185
      %188 = vst [vmem:[#allocation10] sm:$0xff] %v187
      %189 = vst [vmem:[#allocation2] sm:$0xff] %v187
    $region45: #{tpu_custom_call.1} parent=1 // pred_fallthru
      _
    %v190 = vld [vmem:[#allocation2] sm:$0xff]
    %v191 = vld [vmem:[#allocation8] sm:$0xff]
    %v192 = vld [vmem:[#allocation8 + $0x8] sm:$0xff]
    %v193 = vld [vmem:[#allocation8 + $0x10] sm:$0xff]
    %v194 = vld [vmem:[#allocation8 + $0x18] sm:$0xff]
    %v195 = vld [vmem:[#allocation8 + $0x20] sm:$0xff]
    %v196 = vld [vmem:[#allocation8 + $0x28] sm:$0xff]
    %v197 = vld [vmem:[#allocation8 + $0x30] sm:$0xff]
    %v198 = vld [vmem:[#allocation8 + $0x38] sm:$0xff]
    %v199 = vld [vmem:[#allocation8 + $0x40] sm:$0xff]
    %v200 = vld [vmem:[#allocation8 + $0x48] sm:$0xff]
    %v201 = vld [vmem:[#allocation8 + $0x50] sm:$0xff]
    %v202 = vld [vmem:[#allocation8 + $0x58] sm:$0xff]
    %v203 = vld [vmem:[#allocation8 + $0x60] sm:$0xff]
    %v204 = vld [vmem:[#allocation8 + $0x68] sm:$0xff]
    %v205 = vld [vmem:[#allocation8 + $0x70] sm:$0xff]
    %v206 = vld [vmem:[#allocation8 + $0x78] sm:$0xff]
    %v207 = vld [vmem:[%s6] sm:$0x1]
    %v209 = vlaneseq
    %v210 = vshrl.u32 %v209, 7
    %v211 = vsub.s32 0, %v210
    %v212 = vrot.slane %v207, %v211
    %214 = vmatprep.subr.mxu0 0.0
    %215 = vmatpush1.msra.mxu0 %v191
    %216 = vmatprep.subr.mxu0 0.0
    %217 = vmatpush1.msra.mxu0 %v192
    %218 = vmatprep.subr.mxu0 0.0
    %219 = vmatpush1.msra.mxu0 %v193
    %220 = vmatprep.subr.mxu0 0.0
    %221 = vmatpush1.msra.mxu0 %v194
    %222 = vmatprep.subr.mxu0 0.0
    %223 = vmatpush1.msra.mxu0 %v195
    %224 = vmatprep.subr.mxu0 0.0
    %225 = vmatpush1.msra.mxu0 %v196
    %226 = vmatprep.subr.mxu0 0.0
    %227 = vmatpush1.msra.mxu0 %v197
    %228 = vmatprep.subr.mxu0 0.0
    %229 = vmatpush1.msra.mxu0 %v198
    %230 = vmatprep.subr.mxu0 0.0
    %231 = vmatpush1.msra.mxu0 %v199
    %232 = vmatprep.subr.mxu0 0.0
    %233 = vmatpush1.msra.mxu0 %v200
    %234 = vmatprep.subr.mxu0 0.0
    %235 = vmatpush1.msra.mxu0 %v201
    %236 = vmatprep.subr.mxu0 0.0
    %237 = vmatpush1.msra.mxu0 %v202
    %238 = vmatprep.subr.mxu0 0.0
    %239 = vmatpush1.msra.mxu0 %v203
    %240 = vmatprep.subr.mxu0 0.0
    %241 = vmatpush1.msra.mxu0 %v204
    %242 = vmatprep.subr.mxu0 0.0
    %243 = vmatpush1.msra.mxu0 %v205
    %244 = vmatprep.subr.mxu0 0.0
    %245 = vmatpush1.msra.mxu0 %v206
    %246 = vmatprep.subr.mxu0 0.0
    %247 = vmatpush1.msra.mxu0 0.0
    %248 = vmatprep.subr.mxu0 0.0
    %249 = vmatpush1.msra.mxu0 0.0
    %250 = vmatprep.subr.mxu0 0.0
    %251 = vmatpush1.msra.mxu0 0.0
    %252 = vmatprep.subr.mxu0 0.0
    %253 = vmatpush1.msra.mxu0 0.0
    %254 = vmatprep.subr.mxu0 0.0
    %255 = vmatpush1.msra.mxu0 0.0
    %256 = vmatprep.subr.mxu0 0.0
    %257 = vmatpush1.msra.mxu0 0.0
    %258 = vmatprep.subr.mxu0 0.0
    %259 = vmatpush1.msra.mxu0 0.0
    %260 = vmatprep.subr.mxu0 0.0
    %261 = vmatpush1.msra.mxu0 0.0
    %262 = vmatprep.subr.mxu0 0.0
    %263 = vmatpush1.msra.mxu0 0.0
    %264 = vmatprep.subr.mxu0 0.0
    %265 = vmatpush1.msra.mxu0 0.0
    %266 = vmatprep.subr.mxu0 0.0
    %267 = vmatpush1.msra.mxu0 0.0
    %268 = vmatprep.subr.mxu0 0.0
    %269 = vmatpush1.msra.mxu0 0.0
    %270 = vmatprep.subr.mxu0 0.0
    %271 = vmatpush1.msra.mxu0 0.0
    %272 = vmatprep.subr.mxu0 0.0
    %273 = vmatpush1.msra.mxu0 0.0
    %274 = vmatprep.subr.mxu0 0.0
    %275 = vmatpush1.msra.mxu0 0.0
    %276 = vmatprep.subr.mxu0 0.0
    %277 = vmatpush1.msra.mxu0 0.0
    %278 = vmatprep.mubr.f32.mxu0 0.0
    %279 = vmatmul.mubr.f32.gmra.mrb[0].mxu0 %v190
    %v280 = vpop.f32.mrb[0].mxu0
    %v281 = vadd.f32 %v212, %v280
    %v282 = vpop.f32.mrb[0].mxu0
    %283 = vdwg.mxu0
    %284 = vst [vmem:[#allocation9] sm:$0xff] %v281
    // Predicated region
    $region46: #{tpu_custom_call.1} parent=1 // pred_check
      _
    $region47: #{tpu_custom_call.1} parent=1 // pred_check_branch
      %286 = sbr.rel (0) target = $region49
    $region48: #{tpu_custom_call.1} parent=1 // pred_region
      %s288 = ssub.s32 128, 128
      %289 = vsyncadd [#allocation5], %s288
      %s291 = sshll.u32 [#allocation9], 4
      %s292 = int_to_ptr.vmem [resolvable:$true] %s291
      %294 = dma.vmem_to_hbm [thread:$0]  %s292, 128, %s7, [#allocation5]
    $region49: #{tpu_custom_call.1} parent=1 // pred_fallthru
      _
    // Predicated region
    $region50: #{tpu_custom_call.1} parent=1 // pred_check
      _
    $region51: #{tpu_custom_call.1} parent=1 // pred_check_branch
      %296 = sbr.rel (0) target = $region53
    $region52: #{tpu_custom_call.1} parent=1 // pred_region
      %s298 = ssub.s32 128, 128
      %299 = vsyncadd [#allocation11], %s298
      %s301 = sshll.u32 [#allocation10], 4
      %s302 = int_to_ptr.vmem [resolvable:$true] %s301
      %304 = dma.vmem_to_hbm [thread:$0]  %s302, 128, %s8, [#allocation11]
    $region53: #{tpu_custom_call.1} parent=1 // pred_fallthru
      _
    // Predicated region
    $region54: #{tpu_custom_call.1} parent=1 // pred_check
      _
    $region55: #{tpu_custom_call.1} parent=1 // pred_check_branch
      %306 = sbr.rel (0) target = $region57
    $region56: #{tpu_custom_call.1} parent=1 // pred_region
      %307 = dma.done [#allocation5], 128
    $region57: #{tpu_custom_call.1} parent=1 // pred_fallthru
      _
    // Predicated region
    $region58: #{tpu_custom_call.1} parent=1 // pred_check
      _
    $region59: #{tpu_custom_call.1} parent=1 // pred_check_branch
      %309 = sbr.rel (0) target = $region61
    $region60: #{tpu_custom_call.1} parent=1 // pred_region
      %310 = dma.done [#allocation11], 128
    $region61: #{tpu_custom_call.1} parent=1 // pred_fallthru
      _
    %311 = vsyncpa [#allocation4], 1
    %312 = vsyncpa [#allocation7], 1
    %313 = vsyncpa [#allocation5], 1
    %314 = vsyncpa [#allocation11], 1

</llo_original>
